<compile_context>
chip_gen: v7x
topology: tpu7x:2x2x1
jax: 0.10.0
libtpu: 0.0.40
codegen_flags: <defaults>
</compile_context>

<pallas_src>
import functools

import jax
import jax.numpy as jnp
from jax.experimental import pallas as pl
from jax.experimental.pallas import tpu as pltpu


_NUM_PARTS = 2                        # outer "parallel" grid axis (megacore split on v7x)
_VMEM_BUDGET_BYTES = 12 * 1024 * 1024  # total double-buffered footprint target (v5e-safe)


def _round_up(x, m):
    return ((x + m - 1) // m) * m


def _nll_partial_kernel(logits_ref, targets_ref, out_ref, nll_acc_ref, *,
                        n_valid, block_rows):
    """Accumulates sum_i -log_softmax(logits)[i, t_i] over this part's batch tiles."""
    part = pl.program_id(0)
    step = pl.program_id(1)
    num_steps = pl.num_programs(1)

    @pl.when(step == 0)
    def _():
        nll_acc_ref[...] = jnp.zeros_like(nll_acc_ref)

    logits = logits_ref[...].astype(jnp.float32)           # (TM, C), f32 compute
    tgt = targets_ref[...]                                  # (TM, 1) int32
    tm, c = logits.shape

    # Numerically-stable log-sum-exp over the class (lane) axis.
    row_max = jnp.max(logits, axis=-1, keepdims=True)       # (TM, 1)
    shifted = logits - row_max                               # (TM, C)
    lse = jnp.log(jnp.sum(jnp.exp(shifted), axis=-1, keepdims=True))   # (TM, 1)

    # Gather shifted[i, t_i] without materializing log_probs or a float one-hot.
    col_ids = jax.lax.broadcasted_iota(jnp.int32, (tm, c), 1)
    picked = jnp.sum(jnp.where(col_ids == tgt, shifted, 0.0),
                     axis=-1, keepdims=True)                 # (TM, 1)
    nll = lse - picked                                       # (TM, 1)

    # Mask rows that are batch padding.  tile_idx is the *unclamped* logical tile:
    # fully-out-of-range clamp tiles get row_ids >= n_valid everywhere -> 0, and
    # the garbage tail of the last partial tile is zeroed too (select, so any
    # NaN/inf from garbage rows does not propagate).
    tile_idx = part * num_steps + step
    row_ids = tile_idx * block_rows + jax.lax.broadcasted_iota(jnp.int32, (tm, 1), 0)
    nll = jnp.where(row_ids < n_valid, nll, 0.0)

    # Cheap per-step vector add into the persistent accumulator (no per-step
    # cross-sublane reduce, no per-step output RMW).
    nll_acc_ref[...] += nll

    @pl.when(step == num_steps - 1)
    def _():
        out_ref[...] = jnp.zeros_like(out_ref) + jnp.sum(nll_acc_ref[...])


def focal_loss(inputs, targets, *, alpha=1.0, gamma=2.0, block_rows=None):
    """inputs: (N, C) logits; targets: (N,) int class indices -> scalar f32 focal loss."""
    inputs = jnp.asarray(inputs)
    targets = jnp.asarray(targets)
    n, c = inputs.shape

    itemsize = inputs.dtype.itemsize
    # Sublane alignment: 8 for 4-byte dtypes, 16 for bf16, 32 for 1-byte types.
    align = max(8, 32 // itemsize)
    c_pad = _round_up(c, 128)          # lane-padded class width of the VMEM tile

    if block_rows is None:
        # Per-row VMEM bytes: 2x double-buffered native logits tile, ~3x f32
        # upcast / shifted / exp temporaries, 2x lane-padded (tm,1)->(tm,128)
        # int32 target buffers, and the (tm,1) f32 accumulator scratch.
        bytes_per_row = (2 * itemsize * c_pad) + (3 * 4 * c_pad) + (2 * 512) + 512
        block_rows = max(align, _VMEM_BUDGET_BYTES // bytes_per_row)
    tm = max(align, (min(block_rows, _round_up(n, align)) // align) * align)

    tiles = pl.cdiv(n, tm)
    # Only split across TensorCores when each core gets at least 2 full tiles;
    # tiny batches are pure fixed overhead and want the fewest grid steps.
    num_parts = _NUM_PARTS if tiles >= 2 * _NUM_PARTS else 1
    steps_per_part = pl.cdiv(tiles, num_parts)

    # Targets ride as a (N, 1) int32 column (no pad; last partial block reads
    # garbage that is masked in-kernel).  Its 128-lane VMEM padding is counted
    # in the byte budget above.
    targets_2d = targets.astype(jnp.int32).reshape(n, 1)

    def block_index_map(p, s):
        # Clamp so no block starts past the array end (keeps every DMA in
        # bounds); the in-kernel mask uses the unclamped index so clamp-tiles
        # contribute exactly zero.
        return (jnp.minimum(p * steps_per_part + s, tiles - 1), 0)

    kernel = functools.partial(_nll_partial_kernel, n_valid=n, block_rows=tm)

    cost = pl.CostEstimate(
        flops=5 * n * c,
        transcendentals=n * c,
        bytes_accessed=n * c * itemsize + n * 4 + num_parts * 8 * 128 * 4,
    )

    partials = pl.pallas_call(
        kernel,
        out_shape=jax.ShapeDtypeStruct((num_parts, 8, 128), jnp.float32),
        grid_spec=pltpu.PrefetchScalarGridSpec(
            num_scalar_prefetch=0,
            grid=(num_parts, steps_per_part),
            in_specs=[
                pl.BlockSpec((tm, c), block_index_map),
                pl.BlockSpec((tm, 1), block_index_map),
            ],
            out_specs=pl.BlockSpec((1, 8, 128), lambda p, s: (p, 0, 0)),
            scratch_shapes=[pltpu.VMEM((tm, 1), jnp.float32)],
        ),
        compiler_params=pltpu.CompilerParams(
            dimension_semantics=("parallel", "arbitrary")),
        cost_estimate=cost,
    )(inputs, targets_2d)

    # Finish the tiny scalar tail in plain JAX (mean + focal transform).
    nll_sum = jnp.sum(partials[:, 0, 0])
    bce = nll_sum * jnp.float32(1.0 / n)          # reciprocal-multiply, n is static
    pt = jnp.exp(-bce)
    one_m = 1.0 - pt
    g = float(gamma)
    if g.is_integer() and 0 <= g <= 8:
        w = jnp.float32(1.0)
        for _ in range(int(g)):
            w = w * one_m                         # integer gamma: repeated multiply, no pow
    else:
        w = one_m ** jnp.float32(g)
    return (jnp.float32(alpha) * w * bce).astype(jnp.float32)


def _reference_focal_loss(inputs, targets, alpha=1.0, gamma=2.0):
    # Pure-JAX reference (matches torch.nn.CrossEntropyLoss mean reduction + focal tail).
    log_probs = jax.nn.log_softmax(inputs.astype(jnp.float32), axis=-1)
    nll = -jnp.take_along_axis(log_probs, targets[:, None].astype(jnp.int32), axis=-1)[:, 0]
    bce = jnp.mean(nll)
    pt = jnp.exp(-bce)
    return alpha * (1.0 - pt) ** gamma * bce


if __name__ == "__main__":
    key = jax.random.PRNGKey(0)
    k1, k2, k3, k4, k5, k6 = jax.random.split(key, 6)

    # Case 1: small shapes matching the module's typical use (batch of class logits).
    N1, C1 = 8, 32
    x1 = jax.random.normal(k1, (N1, C1), dtype=jnp.float32)
    t1 = jax.random.randint(k2, (N1,), 0, C1, dtype=jnp.int32)
    out1 = jax.block_until_ready(focal_loss(x1, t1, alpha=1.0, gamma=2.0))
    ref1 = _reference_focal_loss(x1, t1, alpha=1.0, gamma=2.0)
    assert jnp.allclose(out1, ref1, rtol=2e-5, atol=1e-5), (out1, ref1)

    # Case 2: exercises batch tiling, the 2-way core split, index-map clamping of
    # the padded part-tile and partial-last-block masking (300 = 4*64 + 44).
    N2, C2 = 300, 40
    x2 = jax.random.normal(k3, (N2, C2), dtype=jnp.float32)
    t2 = jax.random.randint(k4, (N2,), 0, C2, dtype=jnp.int32)
    out2 = jax.block_until_ready(focal_loss(x2, t2, alpha=0.5, gamma=3.0, block_rows=64))
    ref2 = _reference_focal_loss(x2, t2, alpha=0.5, gamma=3.0)
    assert jnp.allclose(out2, ref2, rtol=2e-5, atol=1e-5), (out2, ref2)

    # Case 3: bf16 logits (native-dtype HBM load, f32 in-kernel compute).
    N3, C3 = 64, 32
    x3 = jax.random.normal(k5, (N3, C3), dtype=jnp.bfloat16)
    t3 = jax.random.randint(k6, (N3,), 0, C3, dtype=jnp.int32)
    out3 = jax.block_until_ready(focal_loss(x3, t3, alpha=1.0, gamma=2.0))
    ref3 = _reference_focal_loss(x3, t3, alpha=1.0, gamma=2.0)
    assert jnp.allclose(out3, ref3, rtol=1e-4, atol=1e-4), (out3, ref3)

    print("KERNEL_OK")
</pallas_src>

<mosaic_0001>
module attributes {stable_mosaic.version = 11 : i64} {
  func.func @_nll_partial_kernel(%arg0: i32, %arg1: i32, %arg2: memref<8x32xf32, #tpu.memory_space<vmem>>, %arg3: memref<8x1xi32, #tpu.memory_space<vmem>>, %arg4: memref<1x8x128xf32, #tpu.memory_space<vmem>>, %arg5: memref<8x1xf32, #tpu.memory_space<vmem>>) attributes {dimension_semantics = [#tpu.dimension_semantics<parallel>, #tpu.dimension_semantics<arbitrary>], iteration_bounds = array<i64: 1, 1>, scalar_prefetch = 0 : i64, scratch_operands = 1 : i64, tpu.core_type = #tpu.core_type<tc>, window_params = [{transform_indices = @transform_0, window_bounds = array<i64: 8, 32>}, {transform_indices = @transform_1, window_bounds = array<i64: 8, 1>}, {transform_indices = @transform_2, window_bounds = array<i64: 1, 8, 128>}]} {
    %c0_i32 = arith.constant 0 : i32
    %0 = arith.cmpi eq, %arg1, %c0_i32 : i32
    %1 = arith.extui %0 : i1 to i32
    %c0_i32_0 = arith.constant 0 : i32
    %2 = arith.cmpi ne, %1, %c0_i32_0 : i32
    scf.if %2 {
      %cst_15 = arith.constant 0.000000e+00 : f32
      %37 = vector.broadcast %cst_15 : f32 to vector<8x1xf32>
      %c0_16 = arith.constant 0 : index
      %c0_17 = arith.constant 0 : index
      %38 = vector.load %arg5[%c0_16, %c0_17] : memref<8x1xf32, #tpu.memory_space<vmem>>, vector<8x1xf32>
      tpu.vector_store %arg5[%c0_16, %c0_17], %37 {strides = array<i32>} : memref<8x1xf32, #tpu.memory_space<vmem>>, vector<8x1xf32>,
    } else {
    }
    %c0 = arith.constant 0 : index
    %c0_1 = arith.constant 0 : index
    %3 = vector.load %arg2[%c0, %c0_1] : memref<8x32xf32, #tpu.memory_space<vmem>>, vector<8x32xf32>
    %c0_2 = arith.constant 0 : index
    %c0_3 = arith.constant 0 : index
    %4 = vector.load %arg3[%c0_2, %c0_3] : memref<8x1xi32, #tpu.memory_space<vmem>>, vector<8x1xi32>
    %cst = arith.constant dense<0xFF800000> : vector<8xf32>
    %5 = vector.multi_reduction <maximumf>, %3, %cst [1] : vector<8x32xf32> to vector<8xf32>
    %6 = vector.shape_cast %5 : vector<8xf32> to vector<8x1xf32>
    %7 = vector.broadcast %6 : vector<8x1xf32> to vector<8x32xf32>
    %8 = arith.subf %3, %7 : vector<8x32xf32>
    %9 = math.exp %8 : vector<8x32xf32>
    %cst_4 = arith.constant dense<0.000000e+00> : vector<8xf32>
    %10 = vector.multi_reduction <add>, %9, %cst_4 [1] : vector<8x32xf32> to vector<8xf32>
    %11 = vector.shape_cast %10 : vector<8xf32> to vector<8x1xf32>
    %12 = math.log %11 : vector<8x1xf32>
    %13 = tpu.iota {dimensions = array<i32: 1>} : vector<8x32xi32>
    %14 = vector.broadcast %4 : vector<8x1xi32> to vector<8x32xi32>
    %15 = arith.cmpi eq, %13, %14 : vector<8x32xi32>
    %cst_5 = arith.constant 0.000000e+00 : f32
    %16 = vector.broadcast %cst_5 : f32 to vector<8x32xf32>
    %17 = arith.select %15, %8, %16 : vector<8x32xi1>, vector<8x32xf32>
    %cst_6 = arith.constant dense<0.000000e+00> : vector<8xf32>
    %18 = vector.multi_reduction <add>, %17, %cst_6 [1] : vector<8x32xf32> to vector<8xf32>
    %19 = vector.shape_cast %18 : vector<8xf32> to vector<8x1xf32>
    %20 = arith.subf %12, %19 : vector<8x1xf32>
    %c1_i32 = arith.constant 1 : i32
    %21 = arith.muli %arg0, %c1_i32 : i32
    %22 = arith.addi %21, %arg1 : i32
    %c8_i32 = arith.constant 8 : i32
    %23 = arith.muli %22, %c8_i32 : i32
    %24 = tpu.iota {dimensions = array<i32: 0>} : vector<8x1xi32>
    %25 = vector.broadcast %23 : i32 to vector<8x1xi32>
    %26 = arith.addi %25, %24 : vector<8x1xi32>
    %c8_i32_7 = arith.constant 8 : i32
    %27 = vector.broadcast %c8_i32_7 : i32 to vector<8x1xi32>
    %28 = arith.cmpi slt, %26, %27 : vector<8x1xi32>
    %cst_8 = arith.constant 0.000000e+00 : f32
    %29 = vector.broadcast %cst_8 : f32 to vector<8x1xf32>
    %30 = arith.select %28, %20, %29 : vector<8x1xi1>, vector<8x1xf32>
    %c0_9 = arith.constant 0 : index
    %c0_10 = arith.constant 0 : index
    %31 = vector.load %arg5[%c0_9, %c0_10] : memref<8x1xf32, #tpu.memory_space<vmem>>, vector<8x1xf32>
    %32 = arith.addf %31, %30 : vector<8x1xf32>
    %c0_11 = arith.constant 0 : index
    %c0_12 = arith.constant 0 : index
    %33 = vector.load %arg5[%c0_11, %c0_12] : memref<8x1xf32, #tpu.memory_space<vmem>>, vector<8x1xf32>
    tpu.vector_store %arg5[%c0_11, %c0_12], %32 {strides = array<i32>} : memref<8x1xf32, #tpu.memory_space<vmem>>, vector<8x1xf32>,
    %c0_i32_13 = arith.constant 0 : i32
    %34 = arith.cmpi eq, %arg1, %c0_i32_13 : i32
    %35 = arith.extui %34 : i1 to i32
    %c0_i32_14 = arith.constant 0 : i32
    %36 = arith.cmpi ne, %35, %c0_i32_14 : i32
    scf.if %36 {
      %cst_15 = arith.constant 0.000000e+00 : f32
      %37 = vector.broadcast %cst_15 : f32 to vector<1x8x128xf32>
      %c0_16 = arith.constant 0 : index
      %c0_17 = arith.constant 0 : index
      %38 = vector.load %arg5[%c0_16, %c0_17] : memref<8x1xf32, #tpu.memory_space<vmem>>, vector<8x1xf32>
      %39 = vector.shape_cast %38 : vector<8x1xf32> to vector<1x8x1xf32>
      %cst_18 = arith.constant dense<0.000000e+00> : vector<1xf32>
      %40 = vector.multi_reduction <add>, %39, %cst_18 [1, 2] : vector<1x8x1xf32> to vector<1xf32>
      %41 = vector.shape_cast %40 : vector<1xf32> to vector<1x1x1xf32>
      %42 = vector.extract %41[0, 0, 0] : f32 from vector<1x1x1xf32>
      %43 = vector.broadcast %42 : f32 to vector<1x8x128xf32>
      %44 = arith.addf %37, %43 : vector<1x8x128xf32>
      %c0_19 = arith.constant 0 : index
      %c0_20 = arith.constant 0 : index
      %c0_21 = arith.constant 0 : index
      %45 = vector.load %arg4[%c0_19, %c0_20, %c0_21] : memref<1x8x128xf32, #tpu.memory_space<vmem>>, vector<1x8x128xf32>
      tpu.vector_store %arg4[%c0_19, %c0_20, %c0_21], %44 {strides = array<i32>} : memref<1x8x128xf32, #tpu.memory_space<vmem>>, vector<1x8x128xf32>,
    } else {
    }
    return
  }
  func.func @transform_0(%arg0: i32, %arg1: i32) -> (i32, i32) {
    %c1_i32 = arith.constant 1 : i32
    %0 = arith.muli %arg0, %c1_i32 : i32
    %1 = arith.addi %0, %arg1 : i32
    %c0_i32 = arith.constant 0 : i32
    %2 = arith.minsi %1, %c0_i32 : i32
    %c0_i32_0 = arith.constant 0 : i32
    %c0_i32_1 = arith.constant 0 : i32
    return %2, %c0_i32_0 : i32, i32
  }
  func.func @transform_1(%arg0: i32, %arg1: i32) -> (i32, i32) {
    %c1_i32 = arith.constant 1 : i32
    %0 = arith.muli %arg0, %c1_i32 : i32
    %1 = arith.addi %0, %arg1 : i32
    %c0_i32 = arith.constant 0 : i32
    %2 = arith.minsi %1, %c0_i32 : i32
    %c0_i32_0 = arith.constant 0 : i32
    %c0_i32_1 = arith.constant 0 : i32
    return %2, %c0_i32_0 : i32, i32
  }
  func.func @transform_2(%arg0: i32, %arg1: i32) -> (i32, i32, i32) {
    %c0_i32 = arith.constant 0 : i32
    %c0_i32_0 = arith.constant 0 : i32
    %c0_i32_1 = arith.constant 0 : i32
    return %arg0, %c0_i32, %c0_i32_0 : i32, i32, i32
  }
}

</mosaic_0001>

<llo_original>
// kernel: tpu_custom_call.1
$region0: #{tpu_custom_call.1}
  #allocation0 [shape = 'u32[]', space=smem, size = 0x4, offset = 0x4, fixed_abs, tag = 'smem constant byte address 0x4 - core index']
  #allocation1 [shape = 'u32[144,128]{1,0:T(1,128)}', space=vmem, size = 0x12000, scoped, tag = 'internal scratch']
  #allocation2 [shape = 'f32[8,1]{1,0:T(8,128)}', space=vmem, size = 0x1000, scoped, tag = 'scratch operand']
  %s0 = inlined_call_operand.vmem [shape: f32[8,32], index: 0, kind: input, shape index: {}]
  %s1 = inlined_call_operand.vmem [shape: s32[8,1], index: 1, kind: input, shape index: {}]
  %s2 = inlined_call_operand.hbm [shape: f32[1,8,128], index: 2, kind: output, shape index: {}]
  %s3 = sld [smem:[#allocation0]]
  $region26: #{tpu_custom_call.1} parent=0
    _
  %s5 = ssub.s32 1, %s3
  %s6 = scalar_select 0, %s5, %s3
  $region1: #{tpu_custom_call.1} parent=0
    #allocation3 [shape = 'u8[4096]{0}', space=vmem, size = 0x1000, scoped, tag = 'output window, operand 0, single buffered']
    #allocation4 [shape = 's32[1]{0}', space=sflag, size = 0x4, scoped, tag = 'scoped memory for tpu_custom_call.1']
    %7 = vsyncpa [#allocation4], 0
    // Predicated region
    $region2: #{tpu_custom_call.1} parent=1 // pred_check
      _
    $region3: #{tpu_custom_call.1} parent=1 // pred_check_branch
      %9 = sbr.rel (0) target = $region5
    $region4: #{tpu_custom_call.1} parent=1 // pred_region
      %s10 = sadd.s32 0, 0
      %p11 = scmp.lt.s32.totalorder %s10, 0
      %s12 = scalar_select %p11, %s10, 0
      %p13 = scmp.lt.s32.totalorder %s12, 0
      %s14 = scalar_select %p13, %s12, 0
      %s15 = smul.addr %s14, 8
      %s16 = scalar_lea.vmem %s0, %s15
      %s17 = sadd.s32 0, 0
      %p18 = scmp.lt.s32.totalorder %s17, 0
      %s19 = scalar_select %p18, %s17, 0
    $region5: #{tpu_custom_call.1} parent=1 // pred_fallthru
      _
    // Predicated region
    $region6: #{tpu_custom_call.1} parent=1 // pred_check
      _
    $region7: #{tpu_custom_call.1} parent=1 // pred_check_branch
      %21 = sbr.rel (0) target = $region9
    $region8: #{tpu_custom_call.1} parent=1 // pred_region
      %s22 = sadd.s32 0, 0
      %p23 = scmp.lt.s32.totalorder %s22, 0
      %s24 = scalar_select %p23, %s22, 0
      %p25 = scmp.lt.s32.totalorder %s24, 0
      %s26 = scalar_select %p25, %s24, 0
      %s27 = smul.addr %s26, 8
      %s28 = scalar_lea.vmem %s1, %s27
      %s29 = sadd.s32 0, 0
      %p30 = scmp.lt.s32.totalorder %s29, 0
      %s31 = scalar_select %p30, %s29, 0
    $region9: #{tpu_custom_call.1} parent=1 // pred_fallthru
      _
    %s32 = sadd.s32 0, 0
    %p33 = scmp.lt.s32.totalorder %s32, 0
    %s34 = scalar_select %p33, %s32, 0
    %p35 = scmp.lt.s32.totalorder %s34, 0
    %s36 = scalar_select %p35, %s34, 0
    %s37 = smul.addr %s36, 8
    %s38 = scalar_lea.vmem %s0, %s37
    %s39 = sadd.s32 0, 0
    %p40 = scmp.lt.s32.totalorder %s39, 0
    %s41 = scalar_select %p40, %s39, 0
    %p42 = scmp.lt.s32.totalorder %s41, 0
    %s43 = scalar_select %p42, %s41, 0
    %s44 = smul.addr %s43, 8
    %s45 = scalar_lea.vmem %s1, %s44
    %s46 = sadd.s32 0, 0
    %p47 = scmp.lt.s32.totalorder %s46, 0
    %s48 = scalar_select %p47, %s46, 0
    %p49 = scmp.lt.s32.totalorder %s48, 0
    %s50 = scalar_select %p49, %s48, 0
    %s51 = smul.addr %s50, 8
    %s52 = scalar_lea.vmem %s0, %s51
    %s53 = sadd.s32 0, 0
    %p54 = scmp.lt.s32.totalorder %s53, 0
    %s55 = scalar_select %p54, %s53, 0
    %s56 = sadd.s32 0, 0
    %p57 = scmp.lt.s32.totalorder %s56, 0
    %s58 = scalar_select %p57, %s56, 0
    %p59 = scmp.lt.s32.totalorder %s58, 0
    %s60 = scalar_select %p59, %s58, 0
    %s61 = smul.addr %s60, 8
    %s62 = scalar_lea.vmem %s1, %s61
    %s63 = sadd.s32 0, 0
    %p64 = scmp.lt.s32.totalorder %s63, 0
    %s65 = scalar_select %p64, %s63, 0
    %p66 = scmp.eq.s32.totalorder 0, 0
    // Predicated region
    $region10: #{tpu_custom_call.1} parent=1 // pred_check
      %p67 = pneg %p66
    $region11: #{tpu_custom_call.1} parent=1 // pred_check_branch
      %69 = sbr.rel (%p67) target = $region13
    $region12: #{tpu_custom_call.1} parent=1 // pred_region
      %vm70 = vcmask 7168
      %71 = vst.msk [vmem:[#allocation2] sm:$0xff] %vm70, 0.0
    $region13: #{tpu_custom_call.1} parent=1 // pred_fallthru
      _
    %v72 = vld [vmem:[%s52] sm:$0xff]
    %v73 = vld [vmem:[%s62] sm:$0xff]
    %vm74 = vcmask 261120
    %v75 = vsel %vm74, %v72, -inf
    %76 = vmax.xlane.f32.xlu0 %v75
    %v77 = vpop.xlane.xlu0 %76
    %v78 = vsub.f32 %v72, %v77
    %v79 = vmul.f32 %v78, 1.442695
    %v80 = vpow.pop %v79
    %v81 = vsel %vm74, %v80, 0.0
    %82 = vadd.xlane.f32.xlu0 %v81
    %v83 = vpop.xlane.xlu0 %82
    %v84 = vlog2.pop %v83
    %v85 = vmul.f32 %v84, 0.6931472
    %v86 = vlaneseq
    %v87 = vand.u32 %v86, 127
    %88 = vset.pattern.permute.xlu0 0
    %89 = vperm.xlu0 %88, %v73
    %v90 = vpop.permute.xlu0 %89
    %vm91 = vcmp.eq.s32.totalorder %v87, %v90
    %v92 = vsel %vm91, %v78, 0.0
    %v93 = vsel %vm74, %v92, 0.0
    %94 = vadd.xlane.f32.xlu0 %v93
    %v95 = vpop.xlane.xlu0 %94
    %v96 = vsub.f32 %v85, %v95
    %s97 = sadd.s32 0, 0
    %s98 = smul.u32 %s97, 8
    %v99 = vlaneseq
    %v100 = vshrl.u32 %v99, 7
    %v101 = vstv %s98
    %v102 = vadd.s32 %v101, %v100
    %vm103 = vcmp.lt.s32.totalorder %v102, 8
    %v104 = vsel %vm103, %v96, 0.0
    %v105 = vld [vmem:[#allocation2] sm:$0xff]
    %v106 = vadd.f32 %v105, %v104
    %vm107 = vcmask 7168
    %108 = vst.msk [vmem:[#allocation2] sm:$0xff] %vm107, %v106
    // Predicated region
    $region14: #{tpu_custom_call.1} parent=1 // pred_check
      %p109 = pneg %p66
    $region15: #{tpu_custom_call.1} parent=1 // pred_check_branch
      %111 = sbr.rel (%p109) target = $region17
    $region16: #{tpu_custom_call.1} parent=1 // pred_region
      %v112 = vld [vmem:[#allocation2] sm:$0xff]
      %v113 = vsel %vm107, %v112, 0.0
      %114 = vadd.xlane.f32.xlu0 %v113
      %v115 = vpop.xlane.xlu0 %114
      %v116 = vrot.slane %v115, 4
      %v117 = vadd.f32 %v115, %v116
      %v118 = vrot.slane %v117, 2
      %v119 = vadd.f32 %v117, %v118
      %v120 = vrot.slane %v119, 1
      %v121 = vadd.f32 %v119, %v120
      %s122 = vtos %v121
      %v123 = vstv %s122
      %v124 = vadd.f32 %v123, 0.0
      %125 = vst [vmem:[#allocation3] sm:$0xff] %v124
    $region17: #{tpu_custom_call.1} parent=1 // pred_fallthru
      _
    // Predicated region
    $region18: #{tpu_custom_call.1} parent=1 // pred_check
      _
    $region19: #{tpu_custom_call.1} parent=1 // pred_check_branch
      %127 = sbr.rel (0) target = $region21
    $region20: #{tpu_custom_call.1} parent=1 // pred_region
      %s129 = ssub.s32 128, 128
      %130 = vsyncadd [#allocation4], %s129
      %s132 = sshll.u32 [#allocation3], 4
      %s133 = int_to_ptr.vmem [resolvable:$true] %s132
      %135 = dma.vmem_to_hbm [thread:$0]  %s133, 128, %s2, [#allocation4]
    $region21: #{tpu_custom_call.1} parent=1 // pred_fallthru
      _
    // Predicated region
    $region22: #{tpu_custom_call.1} parent=1 // pred_check
      _
    $region23: #{tpu_custom_call.1} parent=1 // pred_check_branch
      %137 = sbr.rel (0) target = $region25
    $region24: #{tpu_custom_call.1} parent=1 // pred_region
      %138 = dma.done [#allocation4], 128
    $region25: #{tpu_custom_call.1} parent=1 // pred_fallthru
      _
    %139 = vsyncpa [#allocation4], 1

</llo_original>
